<compile_context>
chip_gen: v7x
topology: tpu7x:2x2x1
jax: 0.10.0
libtpu: 0.0.40
codegen_flags: <defaults>
</compile_context>

<pallas_src>
import functools

import jax
import jax.numpy as jnp
from jax.experimental import pallas as pl
from jax.experimental.pallas import tpu as pltpu

_LANE = 128      # vreg lane width (last dim)
_SUBLANE = 8     # vreg sublane width (second-to-last dim, f32)


def _round_up(x, m):
    return (x + m - 1) // m * m


def _mlp_kernel(n_layers, x_ref, *refs):
    """Fused [Linear -> Tanh -> Dropout(eval)] x n_layers on one batch tile.

    refs = (w0, b0, w1, b1, ..., o_ref); all feature dims pre-padded to 128.
    Per layer: y = a @ w (MXU, f32 accum); a = tanh(y + b) (f32 epilogue).
    """
    o_ref = refs[-1]
    wb = refs[:-1]
    a = x_ref[...]                         # bf16 batch tile
    for l in range(n_layers):              # static unroll: layer count is compile-time
        w = wb[2 * l][...]
        b = wb[2 * l + 1][...]
        y = jnp.dot(a, w, preferred_element_type=jnp.float32)   # MXU, f32 acc
        y = y + b.astype(jnp.float32)      # (tm, Fout) + (1, Fout) broadcast
        a = jnp.tanh(y)                    # f32 tanh (EUP slot; v5e-safe)
        if l < n_layers - 1:
            a = a.astype(w.dtype)          # bf16 operand for the next MXU matmul
        # Dropout(p) in eval mode is identity -> nothing to do.
    o_ref[...] = a.astype(o_ref.dtype)


def mlp_forward(x, padded_params, *, out_size, batch_tile=512):
    """x: (B, F_in). padded_params: [(w (Fin_p, Fout_p), b (1, Fout_p)), ...]
    with all feature dims multiples of 128. Returns (B, out_size) in x.dtype."""
    B, Fin = x.shape
    n_layers = len(padded_params)
    f0_pad = padded_params[0][0].shape[0]
    fout_pad = padded_params[-1][0].shape[1]
    param_dtype = padded_params[0][0].dtype
    out_dtype = x.dtype

    # Batch tile: biggest tile that comfortably fits VMEM (per-step overhead
    # ~0.35 us amortizes). On v7x (64 MiB VMEM) with *wide* layers, halve
    # batch_tile (e.g. 256); at 128-wide padded features 512 fits everywhere.
    tm = min(batch_tile, _round_up(B, _SUBLANE))
    b_pad = _round_up(B, tm)
    grid_b = pl.cdiv(b_pad, tm)

    # Zero-pad batch and feature dims; cast to the bf16 compute dtype.
    x_p = jnp.zeros((b_pad, f0_pad), param_dtype).at[:B, :Fin].set(
        x.astype(param_dtype))

    in_specs = [pl.BlockSpec((tm, f0_pad), lambda i: (i, 0))]
    flat_inputs = [x_p]
    for w, b in padded_params:
        in_specs.append(pl.BlockSpec(w.shape, lambda i: (0, 0)))   # VMEM-resident
        in_specs.append(pl.BlockSpec(b.shape, lambda i: (0, 0)))   # VMEM-resident
        flat_inputs.append(w)
        flat_inputs.append(b)

    # Advisory cost hint for XLA's scheduler around the fused custom call.
    flops = 0
    trans = 0
    bytes_accessed = (x_p.size * x_p.dtype.itemsize
                      + b_pad * fout_pad * jnp.dtype(out_dtype).itemsize)
    for w, b in padded_params:
        flops += 2 * b_pad * w.shape[0] * w.shape[1]
        trans += b_pad * w.shape[1]
        bytes_accessed += (w.size + b.size) * w.dtype.itemsize

    out_p = pl.pallas_call(
        functools.partial(_mlp_kernel, n_layers),
        out_shape=jax.ShapeDtypeStruct((b_pad, fout_pad), out_dtype),
        grid=(grid_b,),
        in_specs=in_specs,
        out_specs=pl.BlockSpec((tm, fout_pad), lambda i: (i, 0)),
        compiler_params=pltpu.CompilerParams(
            dimension_semantics=("parallel",)),   # v7x: shard batch over 2 TCs
        cost_estimate=pl.CostEstimate(
            flops=flops, transcendentals=trans, bytes_accessed=bytes_accessed),
    )(*flat_inputs)
    return out_p[:B, :out_size]


class MLPWithoutFC:
    """JAX/Pallas equivalent of MLP_withoutFC (inference mode)."""

    def __init__(self, input_size, hidden_sizes, dropout, key,
                 param_dtype=jnp.bfloat16):
        assert hidden_sizes, "need at least one hidden layer"
        self.dropout = dropout            # eval-mode dropout == identity
        self.input_size = input_size
        self.hidden_sizes = list(hidden_sizes)
        self.param_dtype = param_dtype

        sizes = [input_size] + self.hidden_sizes
        self.params = []          # exact f32 params (reference / export)
        self.padded_params = []   # 128-lane zero-padded, param_dtype (kernel inputs)
        for i in range(len(self.hidden_sizes)):
            fan_in, fan_out = sizes[i], sizes[i + 1]
            key, kw, kb = jax.random.split(key, 3)
            # Deterministic init mimicking nn.Linear's U(-1/sqrt(fan_in), 1/sqrt(fan_in))
            bound = 1.0 / (fan_in ** 0.5)
            w = jax.random.uniform(kw, (fan_in, fan_out), jnp.float32, -bound, bound)
            b = jax.random.uniform(kb, (1, fan_out), jnp.float32, -bound, bound)
            self.params.append((w, b))

            fin_p, fout_p = _round_up(fan_in, _LANE), _round_up(fan_out, _LANE)
            w_p = jnp.zeros((fin_p, fout_p), param_dtype).at[:fan_in, :fan_out].set(
                w.astype(param_dtype))
            b_p = jnp.zeros((1, fout_p), param_dtype).at[:, :fan_out].set(
                b.astype(param_dtype))
            self.padded_params.append((w_p, b_p))

    def __call__(self, x):
        return mlp_forward(x, self.padded_params, out_size=self.hidden_sizes[-1])


if __name__ == "__main__":
    key = jax.random.PRNGKey(0)
    key, kx, kp = jax.random.split(key, 3)

    batch = 8
    input_size = 32
    hidden_sizes = [64, 32]
    dropout = 0.5

    x = jax.random.normal(kx, (batch, input_size), dtype=jnp.float32)

    model = MLPWithoutFC(input_size, hidden_sizes, dropout, kp)
    out = jax.block_until_ready(model(x))
    assert out.shape == (batch, hidden_sizes[-1])

    # Plain-JAX reference mimicking the kernel's mixed precision exactly:
    # bf16 params, bf16 activations between layers, f32 accumulate/bias/tanh.
    sizes = [input_size] + hidden_sizes
    a = x.astype(model.param_dtype)
    for l, (w_p, b_p) in enumerate(model.padded_params):
        fan_in, fan_out = sizes[l], sizes[l + 1]
        w = w_p[:fan_in, :fan_out].astype(jnp.float32)
        b = b_p[:, :fan_out].astype(jnp.float32)
        y = a[:, :fan_in].astype(jnp.float32) @ w + b
        a = jnp.tanh(y)
        if l < len(model.padded_params) - 1:
            a = a.astype(model.param_dtype)
    ref = a.astype(jnp.float32)

    assert jnp.allclose(out, ref, atol=2e-2, rtol=2e-2), (
        float(jnp.max(jnp.abs(out - ref))))

    print("KERNEL_OK")
</pallas_src>

<mosaic_0001>
module attributes {stable_mosaic.version = 11 : i64} {
  func.func @_mlp_kernel(%arg0: i32, %arg1: memref<8x128xbf16, #tpu.memory_space<vmem>>, %arg2: memref<128x128xbf16, #tpu.memory_space<vmem>>, %arg3: memref<1x128xbf16, #tpu.memory_space<vmem>>, %arg4: memref<128x128xbf16, #tpu.memory_space<vmem>>, %arg5: memref<1x128xbf16, #tpu.memory_space<vmem>>, %arg6: memref<8x128xf32, #tpu.memory_space<vmem>>) attributes {dimension_semantics = [#tpu.dimension_semantics<parallel>], iteration_bounds = array<i64: 1>, scalar_prefetch = 0 : i64, scratch_operands = 0 : i64, tpu.core_type = #tpu.core_type<tc>, window_params = [{transform_indices = @transform_0, window_bounds = array<i64: 8, 128>}, {pipeline_mode = #tpu.pipeline_mode<synchronous>, transform_indices = @transform_1, window_bounds = array<i64: 128, 128>}, {pipeline_mode = #tpu.pipeline_mode<synchronous>, transform_indices = @transform_2, window_bounds = array<i64: 1, 128>}, {pipeline_mode = #tpu.pipeline_mode<synchronous>, transform_indices = @transform_3, window_bounds = array<i64: 128, 128>}, {pipeline_mode = #tpu.pipeline_mode<synchronous>, transform_indices = @transform_4, window_bounds = array<i64: 1, 128>}, {transform_indices = @transform_5, window_bounds = array<i64: 8, 128>}]} {
    %c0 = arith.constant 0 : index
    %c0_0 = arith.constant 0 : index
    %0 = vector.load %arg1[%c0, %c0_0] : memref<8x128xbf16, #tpu.memory_space<vmem>>, vector<8x128xbf16>
    %c0_1 = arith.constant 0 : index
    %c0_2 = arith.constant 0 : index
    %1 = vector.load %arg2[%c0_1, %c0_2] : memref<128x128xbf16, #tpu.memory_space<vmem>>, vector<128x128xbf16>
    %c0_3 = arith.constant 0 : index
    %c0_4 = arith.constant 0 : index
    %2 = vector.load %arg3[%c0_3, %c0_4] : memref<1x128xbf16, #tpu.memory_space<vmem>>, vector<1x128xbf16>
    %cst = arith.constant dense<0.000000e+00> : vector<8x128xf32>
    %3 = tpu.matmul %0, %1, %cst {dimension_numbers = #tpu.dot_dimension_numbers<[1], [0], [0], [1], [0, 0, 1, 1], [], []>} : vector<8x128xbf16>, vector<128x128xbf16>, vector<8x128xf32> -> vector<8x128xf32>
    %4 = arith.extf %2 : vector<1x128xbf16> to vector<1x128xf32>
    %5 = vector.broadcast %4 : vector<1x128xf32> to vector<8x128xf32>
    %6 = arith.addf %3, %5 : vector<8x128xf32>
    %7 = math.tanh %6 : vector<8x128xf32>
    %8 = arith.truncf %7 : vector<8x128xf32> to vector<8x128xbf16>
    %c0_5 = arith.constant 0 : index
    %c0_6 = arith.constant 0 : index
    %9 = vector.load %arg4[%c0_5, %c0_6] : memref<128x128xbf16, #tpu.memory_space<vmem>>, vector<128x128xbf16>
    %c0_7 = arith.constant 0 : index
    %c0_8 = arith.constant 0 : index
    %10 = vector.load %arg5[%c0_7, %c0_8] : memref<1x128xbf16, #tpu.memory_space<vmem>>, vector<1x128xbf16>
    %cst_9 = arith.constant dense<0.000000e+00> : vector<8x128xf32>
    %11 = tpu.matmul %8, %9, %cst_9 {dimension_numbers = #tpu.dot_dimension_numbers<[1], [0], [0], [1], [0, 0, 1, 1], [], []>} : vector<8x128xbf16>, vector<128x128xbf16>, vector<8x128xf32> -> vector<8x128xf32>
    %12 = arith.extf %10 : vector<1x128xbf16> to vector<1x128xf32>
    %13 = vector.broadcast %12 : vector<1x128xf32> to vector<8x128xf32>
    %14 = arith.addf %11, %13 : vector<8x128xf32>
    %15 = math.tanh %14 : vector<8x128xf32>
    %c0_10 = arith.constant 0 : index
    %c0_11 = arith.constant 0 : index
    %16 = vector.load %arg6[%c0_10, %c0_11] : memref<8x128xf32, #tpu.memory_space<vmem>>, vector<8x128xf32>
    tpu.vector_store %arg6[%c0_10, %c0_11], %15 {strides = array<i32>} : memref<8x128xf32, #tpu.memory_space<vmem>>, vector<8x128xf32>,
    return
  }
  func.func @transform_0(%arg0: i32) -> (i32, i32) {
    %c0_i32 = arith.constant 0 : i32
    %c0_i32_0 = arith.constant 0 : i32
    return %arg0, %c0_i32 : i32, i32
  }
  func.func @transform_1(%arg0: i32) -> (i32, i32) {
    %c0_i32 = arith.constant 0 : i32
    %c0_i32_0 = arith.constant 0 : i32
    %c0_i32_1 = arith.constant 0 : i32
    return %c0_i32, %c0_i32_0 : i32, i32
  }
  func.func @transform_2(%arg0: i32) -> (i32, i32) {
    %c0_i32 = arith.constant 0 : i32
    %c0_i32_0 = arith.constant 0 : i32
    %c0_i32_1 = arith.constant 0 : i32
    return %c0_i32, %c0_i32_0 : i32, i32
  }
  func.func @transform_3(%arg0: i32) -> (i32, i32) {
    %c0_i32 = arith.constant 0 : i32
    %c0_i32_0 = arith.constant 0 : i32
    %c0_i32_1 = arith.constant 0 : i32
    return %c0_i32, %c0_i32_0 : i32, i32
  }
  func.func @transform_4(%arg0: i32) -> (i32, i32) {
    %c0_i32 = arith.constant 0 : i32
    %c0_i32_0 = arith.constant 0 : i32
    %c0_i32_1 = arith.constant 0 : i32
    return %c0_i32, %c0_i32_0 : i32, i32
  }
  func.func @transform_5(%arg0: i32) -> (i32, i32) {
    %c0_i32 = arith.constant 0 : i32
    %c0_i32_0 = arith.constant 0 : i32
    return %arg0, %c0_i32 : i32, i32
  }
}

</mosaic_0001>

<llo_original>
// kernel: tpu_custom_call.1
$region0: #{tpu_custom_call.1}
  #allocation0 [shape = 'u32[]', space=smem, size = 0x4, offset = 0x4, fixed_abs, tag = 'smem constant byte address 0x4 - core index']
  #allocation1 [shape = 'u32[144,128]{1,0:T(1,128)}', space=vmem, size = 0x12000, scoped, tag = 'internal scratch']
  %s0 = inlined_call_operand.hbm [shape: bf16[8,128], index: 0, kind: input, shape index: {}]
  %s1 = inlined_call_operand.hbm [shape: bf16[128,128], index: 1, kind: input, shape index: {}]
  %s2 = inlined_call_operand.vmem [shape: bf16[1,128], index: 2, kind: input, shape index: {}]
  %s3 = inlined_call_operand.hbm [shape: bf16[128,128], index: 3, kind: input, shape index: {}]
  %s4 = inlined_call_operand.vmem [shape: bf16[1,128], index: 4, kind: input, shape index: {}]
  %s5 = inlined_call_operand.hbm [shape: f32[8,128], index: 5, kind: output, shape index: {}]
  %s6 = sld [smem:[#allocation0]]
  $region42: #{tpu_custom_call.1} parent=0
    _
  %s8 = ssub.s32 1, %s6
  %s9 = scalar_select 0, %s8, %s6
  $region1: #{tpu_custom_call.1} parent=0
    #allocation2 [shape = 'u8[2048]{0}', space=vmem, size = 0x800, scoped, tag = 'input window, operand 0, single buffered']
    #allocation3 [shape = 's32[1]{0}', space=sflag, size = 0x4, scoped, tag = 'scoped memory for tpu_custom_call.1']
    #allocation4 [shape = 's32[1]{0}', space=sflag, size = 0x4, scoped, tag = 'scoped memory for tpu_custom_call.1']
    #allocation5 [shape = 'u8[32768]{0}', space=vmem, size = 0x8000, scoped, tag = 'input window, operand 1, single buffered']
    #allocation6 [shape = 's32[1]{0}', space=sflag, size = 0x4, scoped, tag = 'scoped memory for tpu_custom_call.1']
    #allocation7 [shape = 'u8[32768]{0}', space=vmem, size = 0x8000, scoped, tag = 'input window, operand 3, single buffered']
    #allocation8 [shape = 'u8[4096]{0}', space=vmem, size = 0x1000, scoped, tag = 'output window, operand 0, single buffered']
    %10 = vsyncpa [#allocation3], 0
    %11 = vsyncpa [#allocation6], 0
    %12 = vsyncpa [#allocation4], 0
    // Predicated region
    $region2: #{tpu_custom_call.1} parent=1 // pred_check
      _
    $region3: #{tpu_custom_call.1} parent=1 // pred_check_branch
      %14 = sbr.rel (0) target = $region5
    $region4: #{tpu_custom_call.1} parent=1 // pred_region
      %s16 = ssub.s32 64, 64
      %17 = vsyncadd [#allocation3], %s16
      %s19 = sshll.u32 [#allocation2], 4
      %s20 = int_to_ptr.vmem [resolvable:$true] %s19
      %22 = dma.hbm_to_vmem [thread:$0]  %s0, 64, %s20, [#allocation3]
    $region5: #{tpu_custom_call.1} parent=1 // pred_fallthru
      _
    // Predicated region
    $region6: #{tpu_custom_call.1} parent=1 // pred_check
      _
    $region7: #{tpu_custom_call.1} parent=1 // pred_check_branch
      %24 = sbr.rel (0) target = $region9
    $region8: #{tpu_custom_call.1} parent=1 // pred_region
      %s26 = ssub.s32 1024, 1024
      %27 = vsyncadd [#allocation6], %s26
      %s28 = sshll.u32 [#allocation5], 4
      %s29 = int_to_ptr.vmem [resolvable:$true] %s28
      %34 = dma.hbm_to_vmem [thread:$0]  %s1, 1024, %s29, [#allocation6], 64, 64, 4
    $region9: #{tpu_custom_call.1} parent=1 // pred_fallthru
      _
    // Predicated region
    $region10: #{tpu_custom_call.1} parent=1 // pred_check
      _
    $region11: #{tpu_custom_call.1} parent=1 // pred_check_branch
      %36 = sbr.rel (0) target = $region13
    $region12: #{tpu_custom_call.1} parent=1 // pred_region
      _
    $region13: #{tpu_custom_call.1} parent=1 // pred_fallthru
      _
    // Predicated region
    $region14: #{tpu_custom_call.1} parent=1 // pred_check
      _
    $region15: #{tpu_custom_call.1} parent=1 // pred_check_branch
      %38 = sbr.rel (0) target = $region17
    $region16: #{tpu_custom_call.1} parent=1 // pred_region
      %s40 = ssub.s32 1024, 1024
      %41 = vsyncadd [#allocation6], %s40
      %s42 = sshll.u32 [#allocation7], 4
      %s43 = int_to_ptr.vmem [resolvable:$true] %s42
      %48 = dma.hbm_to_vmem [thread:$0]  %s3, 1024, %s43, [#allocation6], 64, 64, 4
    $region17: #{tpu_custom_call.1} parent=1 // pred_fallthru
      _
    // Predicated region
    $region18: #{tpu_custom_call.1} parent=1 // pred_check
      _
    $region19: #{tpu_custom_call.1} parent=1 // pred_check_branch
      %50 = sbr.rel (0) target = $region21
    $region20: #{tpu_custom_call.1} parent=1 // pred_region
      _
    $region21: #{tpu_custom_call.1} parent=1 // pred_fallthru
      _
    // Predicated region
    $region22: #{tpu_custom_call.1} parent=1 // pred_check
      _
    $region23: #{tpu_custom_call.1} parent=1 // pred_check_branch
      %52 = sbr.rel (0) target = $region25
    $region24: #{tpu_custom_call.1} parent=1 // pred_region
      %53 = dma.done [#allocation3], 64
    $region25: #{tpu_custom_call.1} parent=1 // pred_fallthru
      _
    // Predicated region
    $region26: #{tpu_custom_call.1} parent=1 // pred_check
      _
    $region27: #{tpu_custom_call.1} parent=1 // pred_check_branch
      %55 = sbr.rel (0) target = $region29
    $region28: #{tpu_custom_call.1} parent=1 // pred_region
      %56 = dma.done [#allocation6], 1024
    $region29: #{tpu_custom_call.1} parent=1 // pred_fallthru
      _
    // Predicated region
    $region30: #{tpu_custom_call.1} parent=1 // pred_check
      _
    $region31: #{tpu_custom_call.1} parent=1 // pred_check_branch
      %58 = sbr.rel (0) target = $region33
    $region32: #{tpu_custom_call.1} parent=1 // pred_region
      %59 = dma.done [#allocation6], 1024
    $region33: #{tpu_custom_call.1} parent=1 // pred_fallthru
      _
    %v61 = vld [vmem:[#allocation2] sm:$0xf]
    %v62 = vld [vmem:[#allocation5] sm:$0xf]
    %v63 = vld [vmem:[#allocation5 + $0x4] sm:$0xf]
    %v64 = vld [vmem:[#allocation5 + $0x8] sm:$0xf]
    %v65 = vld [vmem:[#allocation5 + $0xc] sm:$0xf]
    %v66 = vld [vmem:[#allocation5 + $0x10] sm:$0xf]
    %v67 = vld [vmem:[#allocation5 + $0x14] sm:$0xf]
    %v68 = vld [vmem:[#allocation5 + $0x18] sm:$0xf]
    %v69 = vld [vmem:[#allocation5 + $0x1c] sm:$0xf]
    %v70 = vld [vmem:[#allocation5 + $0x20] sm:$0xf]
    %v71 = vld [vmem:[#allocation5 + $0x24] sm:$0xf]
    %v72 = vld [vmem:[#allocation5 + $0x28] sm:$0xf]
    %v73 = vld [vmem:[#allocation5 + $0x2c] sm:$0xf]
    %v74 = vld [vmem:[#allocation5 + $0x30] sm:$0xf]
    %v75 = vld [vmem:[#allocation5 + $0x34] sm:$0xf]
    %v76 = vld [vmem:[#allocation5 + $0x38] sm:$0xf]
    %v77 = vld [vmem:[#allocation5 + $0x3c] sm:$0xf]
    %v78 = vld [vmem:[%s2] sm:$0x1]
    %v79 = vunpack.c.l.bf16 %v78
    %v80 = vlaneseq
    %v81 = vshrl.u32 %v80, 7
    %v82 = vsub.s32 0, %v81
    %v83 = vrot.slane %v79, %v82
    %v100 = vunpack.c.l.b16 %v62
    %v101 = vunpack.c.l.b16 %v63
    %v102 = vunpack.c.l.b16 %v64
    %v103 = vunpack.c.l.b16 %v65
    %v104 = vunpack.c.l.b16 %v66
    %v105 = vunpack.c.l.b16 %v67
    %v106 = vunpack.c.l.b16 %v68
    %v107 = vunpack.c.l.b16 %v69
    %v108 = vunpack.c.l.b16 %v70
    %v109 = vunpack.c.l.b16 %v71
    %v110 = vunpack.c.l.b16 %v72
    %v111 = vunpack.c.l.b16 %v73
    %v112 = vunpack.c.l.b16 %v74
    %v113 = vunpack.c.l.b16 %v75
    %v114 = vunpack.c.l.b16 %v76
    %v115 = vunpack.c.l.b16 %v77
    %v116 = vpack.c.b16 %v101, %v100
    %v117 = vpack.c.b16 %v103, %v102
    %v118 = vpack.c.b16 %v105, %v104
    %v119 = vpack.c.b16 %v107, %v106
    %v120 = vpack.c.b16 %v109, %v108
    %v121 = vpack.c.b16 %v111, %v110
    %v122 = vpack.c.b16 %v113, %v112
    %v123 = vpack.c.b16 %v115, %v114
    %132 = vmatprep.subr.bf16.mxu0 0
    %133 = vmatpush1.bf16.msra.mxu0 %v116
    %134 = vmatprep.subr.bf16.mxu0 0
    %135 = vmatpush1.bf16.msra.mxu0 %v117
    %136 = vmatprep.subr.bf16.mxu0 0
    %137 = vmatpush1.bf16.msra.mxu0 %v118
    %138 = vmatprep.subr.bf16.mxu0 0
    %139 = vmatpush1.bf16.msra.mxu0 %v119
    %140 = vmatprep.subr.bf16.mxu0 0
    %141 = vmatpush1.bf16.msra.mxu0 %v120
    %142 = vmatprep.subr.bf16.mxu0 0
    %143 = vmatpush1.bf16.msra.mxu0 %v121
    %144 = vmatprep.subr.bf16.mxu0 0
    %145 = vmatpush1.bf16.msra.mxu0 %v122
    %146 = vmatprep.subr.bf16.mxu0 0
    %147 = vmatpush1.bf16.msra.mxu0 %v123
    %148 = vmatprep.subr.bf16.mxu0 0
    %149 = vmatpush1.bf16.msra.mxu0 0
    %150 = vmatprep.subr.bf16.mxu0 0
    %151 = vmatpush1.bf16.msra.mxu0 0
    %152 = vmatprep.subr.bf16.mxu0 0
    %153 = vmatpush1.bf16.msra.mxu0 0
    %154 = vmatprep.subr.bf16.mxu0 0
    %155 = vmatpush1.bf16.msra.mxu0 0
    %156 = vmatprep.subr.bf16.mxu0 0
    %157 = vmatpush1.bf16.msra.mxu0 0
    %158 = vmatprep.subr.bf16.mxu0 0
    %159 = vmatpush1.bf16.msra.mxu0 0
    %160 = vmatprep.subr.bf16.mxu0 0
    %161 = vmatpush1.bf16.msra.mxu0 0
    %162 = vmatprep.subr.bf16.mxu0 0
    %163 = vmatpush1.bf16.msra.mxu0 0
    %164 = vmatprep.mubr.bf16.mxu0 0
    %165 = vmatmul.mubr.bf16.gmra.mrb[0].mxu0 %v61
    %v166 = vpop.f32.mrb[0].mxu0
    %v167 = vadd.f32 %v83, %v166
    %v168 = vpop.f32.mrb[0].mxu0
    %v169 = vpop.f32.mrb[0].mxu0
    %v170 = vpop.f32.mrb[0].mxu0
    %171 = vdwg.mxu0
    %v172 = vtanh.pop %v167
    %v173 = vpack.c.bf16 %v172, %v172
    %v174 = vld [vmem:[#allocation7] sm:$0xf]
    %v175 = vld [vmem:[#allocation7 + $0x4] sm:$0xf]
    %v176 = vld [vmem:[#allocation7 + $0x8] sm:$0xf]
    %v177 = vld [vmem:[#allocation7 + $0xc] sm:$0xf]
    %v178 = vld [vmem:[#allocation7 + $0x10] sm:$0xf]
    %v179 = vld [vmem:[#allocation7 + $0x14] sm:$0xf]
    %v180 = vld [vmem:[#allocation7 + $0x18] sm:$0xf]
    %v181 = vld [vmem:[#allocation7 + $0x1c] sm:$0xf]
    %v182 = vld [vmem:[#allocation7 + $0x20] sm:$0xf]
    %v183 = vld [vmem:[#allocation7 + $0x24] sm:$0xf]
    %v184 = vld [vmem:[#allocation7 + $0x28] sm:$0xf]
    %v185 = vld [vmem:[#allocation7 + $0x2c] sm:$0xf]
    %v186 = vld [vmem:[#allocation7 + $0x30] sm:$0xf]
    %v187 = vld [vmem:[#allocation7 + $0x34] sm:$0xf]
    %v188 = vld [vmem:[#allocation7 + $0x38] sm:$0xf]
    %v189 = vld [vmem:[#allocation7 + $0x3c] sm:$0xf]
    %v190 = vld [vmem:[%s4] sm:$0x1]
    %v191 = vunpack.c.l.bf16 %v190
    %v192 = vlaneseq
    %v193 = vshrl.u32 %v192, 7
    %v194 = vsub.s32 0, %v193
    %v195 = vrot.slane %v191, %v194
    %v212 = vunpack.c.l.b16 %v174
    %v213 = vunpack.c.l.b16 %v175
    %v214 = vunpack.c.l.b16 %v176
    %v215 = vunpack.c.l.b16 %v177
    %v216 = vunpack.c.l.b16 %v178
    %v217 = vunpack.c.l.b16 %v179
    %v218 = vunpack.c.l.b16 %v180
    %v219 = vunpack.c.l.b16 %v181
    %v220 = vunpack.c.l.b16 %v182
    %v221 = vunpack.c.l.b16 %v183
    %v222 = vunpack.c.l.b16 %v184
    %v223 = vunpack.c.l.b16 %v185
    %v224 = vunpack.c.l.b16 %v186
    %v225 = vunpack.c.l.b16 %v187
    %v226 = vunpack.c.l.b16 %v188
    %v227 = vunpack.c.l.b16 %v189
    %v228 = vpack.c.b16 %v213, %v212
    %v229 = vpack.c.b16 %v215, %v214
    %v230 = vpack.c.b16 %v217, %v216
    %v231 = vpack.c.b16 %v219, %v218
    %v232 = vpack.c.b16 %v221, %v220
    %v233 = vpack.c.b16 %v223, %v222
    %v234 = vpack.c.b16 %v225, %v224
    %v235 = vpack.c.b16 %v227, %v226
    %244 = vmatprep.subr.bf16.mxu0 0
    %245 = vmatpush1.bf16.msra.mxu0 %v228
    %246 = vmatprep.subr.bf16.mxu0 0
    %247 = vmatpush1.bf16.msra.mxu0 %v229
    %248 = vmatprep.subr.bf16.mxu0 0
    %249 = vmatpush1.bf16.msra.mxu0 %v230
    %250 = vmatprep.subr.bf16.mxu0 0
    %251 = vmatpush1.bf16.msra.mxu0 %v231
    %252 = vmatprep.subr.bf16.mxu0 0
    %253 = vmatpush1.bf16.msra.mxu0 %v232
    %254 = vmatprep.subr.bf16.mxu0 0
    %255 = vmatpush1.bf16.msra.mxu0 %v233
    %256 = vmatprep.subr.bf16.mxu0 0
    %257 = vmatpush1.bf16.msra.mxu0 %v234
    %258 = vmatprep.subr.bf16.mxu0 0
    %259 = vmatpush1.bf16.msra.mxu0 %v235
    %260 = vmatprep.subr.bf16.mxu0 0
    %261 = vmatpush1.bf16.msra.mxu0 0
    %262 = vmatprep.subr.bf16.mxu0 0
    %263 = vmatpush1.bf16.msra.mxu0 0
    %264 = vmatprep.subr.bf16.mxu0 0
    %265 = vmatpush1.bf16.msra.mxu0 0
    %266 = vmatprep.subr.bf16.mxu0 0
    %267 = vmatpush1.bf16.msra.mxu0 0
    %268 = vmatprep.subr.bf16.mxu0 0
    %269 = vmatpush1.bf16.msra.mxu0 0
    %270 = vmatprep.subr.bf16.mxu0 0
    %271 = vmatpush1.bf16.msra.mxu0 0
    %272 = vmatprep.subr.bf16.mxu0 0
    %273 = vmatpush1.bf16.msra.mxu0 0
    %274 = vmatprep.subr.bf16.mxu0 0
    %275 = vmatpush1.bf16.msra.mxu0 0
    %276 = vmatprep.mubr.bf16.mxu0 0
    %277 = vmatmul.mubr.bf16.gmra.mrb[0].mxu0 %v173
    %v278 = vpop.f32.mrb[0].mxu0
    %v279 = vadd.f32 %v195, %v278
    %v280 = vpop.f32.mrb[0].mxu0
    %v281 = vpop.f32.mrb[0].mxu0
    %v282 = vpop.f32.mrb[0].mxu0
    %283 = vdwg.mxu0
    %v284 = vtanh.pop %v279
    %285 = vst [vmem:[#allocation8] sm:$0xff] %v284
    // Predicated region
    $region34: #{tpu_custom_call.1} parent=1 // pred_check
      _
    $region35: #{tpu_custom_call.1} parent=1 // pred_check_branch
      %287 = sbr.rel (0) target = $region37
    $region36: #{tpu_custom_call.1} parent=1 // pred_region
      %s289 = ssub.s32 128, 128
      %290 = vsyncadd [#allocation4], %s289
      %s292 = sshll.u32 [#allocation8], 4
      %s293 = int_to_ptr.vmem [resolvable:$true] %s292
      %295 = dma.vmem_to_hbm [thread:$0]  %s293, 128, %s5, [#allocation4]
    $region37: #{tpu_custom_call.1} parent=1 // pred_fallthru
      _
    // Predicated region
    $region38: #{tpu_custom_call.1} parent=1 // pred_check
      _
    $region39: #{tpu_custom_call.1} parent=1 // pred_check_branch
      %297 = sbr.rel (0) target = $region41
    $region40: #{tpu_custom_call.1} parent=1 // pred_region
      %298 = dma.done [#allocation4], 128
    $region41: #{tpu_custom_call.1} parent=1 // pred_fallthru
      _
    %299 = vsyncpa [#allocation3], 1
    %300 = vsyncpa [#allocation6], 1
    %301 = vsyncpa [#allocation4], 1

</llo_original>
